<compile_context>
chip_gen: v5e
topology: v5e:2x2
jax: 0.10.0
libtpu: 0.0.40
codegen_flags: <defaults>
</compile_context>

<pallas_src>
import jax
import jax.numpy as jnp
from jax.experimental import pallas as pl
from jax.experimental.pallas import tpu as pltpu


def rbf_net_kernel(x_ref, sb_ref, centers_ref, weight_ref, o_ref):
    # x_ref:       SMEM (N, 1)  raw input; only row 0 is needed (score[0]).
    # sb_ref:      SMEM (2,)    [1/(2*sigma^2), bias]  (pre-packed at init)
    # centers_ref: VMEM (1, C)  lane-dense centers
    # weight_ref:  VMEM (1, C)  lane-dense nn.Linear weight row
    # o_ref:       SMEM (1,)    scalar result = score[0]
    x0 = x_ref[0, 0]                     # scalar slot read, essentially free
    inv_two_sigma_sq = sb_ref[0]
    bias = sb_ref[1]

    diff = x0 - centers_ref[...]                          # (1, C) VPU
    radial = jnp.exp(-inv_two_sigma_sq * diff * diff)     # Gaussian RBF (EUP)

    # nn.Linear(C, 1) for the single returned row:
    # VPU multiply + XLU cross-lane reduce straight to the scalar path.
    score = jnp.sum(radial * weight_ref[...]) + bias      # scalar
    o_ref[0] = score


def prepare_rbf_params(centers, sigma, weight, bias):
    """One-time packing at parameter-init time (NOT in the per-call hot path).

    centers: (C,) f32; sigma: float; weight: (1, C) f32 (PyTorch Linear
    layout); bias: (1,) f32.  Returns (scalars (2,), centers2d (1,C),
    weight2d (1,C)) ready to feed rbf_net_forward on every call.
    """
    C = centers.shape[0]
    sig = jnp.asarray(sigma, jnp.float32)
    scalars = jnp.stack(
        [
            (1.0 / (2.0 * sig * sig)).astype(jnp.float32),
            bias.reshape(-1)[0].astype(jnp.float32),
        ]
    )  # (2,)
    # Lane-dense (C on the lane axis).  C < 128 leaves lanes unused, but C is
    # fixed by num_centers; for large C, tile in 128-lane multiples instead.
    centers2d = centers.reshape(1, C).astype(jnp.float32)
    weight2d = weight.reshape(1, C).astype(jnp.float32)
    return scalars, centers2d, weight2d


def rbf_net_forward(x, scalars, centers2d, weight2d):
    """x: (N, 1) f32 (already sorted along axis 0 by the caller, as in the
    reference script).  Returns score[0] of the PyTorch forward, shape (1,)."""
    return pl.pallas_call(
        rbf_net_kernel,
        out_shape=jax.ShapeDtypeStruct((1,), jnp.float32),
        in_specs=[
            pl.BlockSpec(memory_space=pltpu.MemorySpace.SMEM),  # x        (N, 1)
            pl.BlockSpec(memory_space=pltpu.MemorySpace.SMEM),  # scalars  (2,)
            pl.BlockSpec(memory_space=pltpu.MemorySpace.VMEM),  # centers  (1, C)
            pl.BlockSpec(memory_space=pltpu.MemorySpace.VMEM),  # weight   (1, C)
        ],
        out_specs=pl.BlockSpec(memory_space=pltpu.MemorySpace.SMEM),
    )(x, scalars, centers2d, weight2d)


if __name__ == "__main__":
    key = jax.random.PRNGKey(0)
    k_x, k_c, k_w, k_b = jax.random.split(key, 4)

    N = 8            # number of input samples
    C = 32           # num_centers
    sigma = 0.5

    # X sorted along axis 0, as in the reference script (np.sort(X, axis=0)).
    x = jnp.sort(jax.random.normal(k_x, (N, 1), dtype=jnp.float32), axis=0)
    centers = jax.random.normal(k_c, (C,), dtype=jnp.float32)

    # Deterministic init for nn.Linear(num_centers, 1, bias=True)
    bound = 1.0 / (C ** 0.5)
    weight = jax.random.uniform(k_w, (1, C), jnp.float32, -bound, bound)
    bias = jax.random.uniform(k_b, (1,), jnp.float32, -bound, bound)

    # Parameter-init-time packing (outside the per-call hot path).
    scalars, centers2d, weight2d = prepare_rbf_params(centers, sigma, weight, bias)

    out = rbf_net_forward(x, scalars, centers2d, weight2d)
    out = jax.block_until_ready(out)

    # Pure-JAX reference check against the full PyTorch forward semantics.
    radial_ref = jnp.exp(-1.0 / (2.0 * sigma ** 2) * (x - centers.reshape(1, C)) ** 2)
    score_ref = radial_ref @ weight.T + bias
    assert out.shape == (1,)
    assert jnp.allclose(out, score_ref[0], atol=1e-5, rtol=1e-5)

    print("KERNEL_OK")
</pallas_src>

<mosaic_0001>
module attributes {stable_mosaic.version = 11 : i64} {
  func.func @rbf_net_kernel(%arg0: memref<8x1xf32, #tpu.memory_space<smem>>, %arg1: memref<2xf32, #tpu.memory_space<smem>>, %arg2: memref<1x32xf32, #tpu.memory_space<vmem>>, %arg3: memref<1x32xf32, #tpu.memory_space<vmem>>, %arg4: memref<1xf32, #tpu.memory_space<smem>>) attributes {dimension_semantics = [], scalar_prefetch = 0 : i64, scratch_operands = 0 : i64, tpu.core_type = #tpu.core_type<tc>} {
    %c0 = arith.constant 0 : index
    %c0_0 = arith.constant 0 : index
    %0 = memref.load %arg0[%c0, %c0_0] : memref<8x1xf32, #tpu.memory_space<smem>>
    %c0_1 = arith.constant 0 : index
    %1 = memref.load %arg1[%c0_1] : memref<2xf32, #tpu.memory_space<smem>>
    %c1 = arith.constant 1 : index
    %2 = memref.load %arg1[%c1] : memref<2xf32, #tpu.memory_space<smem>>
    %c0_2 = arith.constant 0 : index
    %c0_3 = arith.constant 0 : index
    %3 = vector.load %arg2[%c0_2, %c0_3] : memref<1x32xf32, #tpu.memory_space<vmem>>, vector<1x32xf32>
    %4 = vector.broadcast %0 : f32 to vector<1x32xf32>
    %5 = arith.subf %4, %3 : vector<1x32xf32>
    %cst = arith.constant 0.000000e+00 : f32
    %6 = arith.subf %cst, %1 : f32
    %7 = vector.broadcast %6 : f32 to vector<1x32xf32>
    %8 = arith.mulf %7, %5 : vector<1x32xf32>
    %9 = arith.mulf %8, %5 : vector<1x32xf32>
    %10 = math.exp %9 : vector<1x32xf32>
    %c0_4 = arith.constant 0 : index
    %c0_5 = arith.constant 0 : index
    %11 = vector.load %arg3[%c0_4, %c0_5] : memref<1x32xf32, #tpu.memory_space<vmem>>, vector<1x32xf32>
    %12 = arith.mulf %10, %11 : vector<1x32xf32>
    %13 = vector.shape_cast %12 : vector<1x32xf32> to vector<1x1x32xf32>
    %cst_6 = arith.constant dense<0.000000e+00> : vector<1xf32>
    %14 = vector.multi_reduction <add>, %13, %cst_6 [1, 2] : vector<1x1x32xf32> to vector<1xf32>
    %15 = vector.shape_cast %14 : vector<1xf32> to vector<1x1x1xf32>
    %16 = vector.extract %15[0, 0, 0] : f32 from vector<1x1x1xf32>
    %17 = arith.addf %16, %2 : f32
    %c0_7 = arith.constant 0 : index
    %18 = memref.load %arg4[%c0_7] : memref<1xf32, #tpu.memory_space<smem>>
    memref.store %17, %arg4[%c0_7] : memref<1xf32, #tpu.memory_space<smem>>
    return
  }
}

</mosaic_0001>

<llo_original>
// kernel: tpu_custom_call.1
$region0: #{tpu_custom_call.1}
  #allocation0 [shape = 'u32[]', space=smem, size = 0x4, offset = 0x4, fixed_abs, tag = 'smem constant byte address 0x4 - core index']
  #allocation1 [shape = 'u32[72,128]{1,0:T(1,128)}', space=vmem, size = 0x9000, scoped, tag = 'internal scratch']
  %s0 = inlined_call_operand.vmem [shape: f32[8,1], index: 0, kind: input, shape index: {}]
  %s1 = inlined_call_operand.vmem [shape: f32[2], index: 1, kind: input, shape index: {}]
  %s2 = inlined_call_operand.vmem [shape: f32[1,32], index: 2, kind: input, shape index: {}]
  %s3 = inlined_call_operand.vmem [shape: f32[1,32], index: 3, kind: input, shape index: {}]
  %s4 = inlined_call_operand.hbm [shape: f32[1], index: 4, kind: output, shape index: {}]
  %s5 = sld [smem:[#allocation0]]
  $region34: #{tpu_custom_call.1} parent=0
    _
  %s7 = ssub.s32 1, %s5
  %s8 = scalar_select 0, %s7, %s5
  $region1: #{tpu_custom_call.1} parent=0
    #allocation2 [shape = 'u8[4096]{0}', space=smem, size = 0x1000, scoped, tag = 'input window, operand 0, single buffered']
    #allocation3 [shape = 's32[1]{0}', space=sflag, size = 0x4, scoped, tag = 'scoped memory for tpu_custom_call.1']
    #allocation4 [shape = 's32[1]{0}', space=sflag, size = 0x4, scoped, tag = 'scoped memory for tpu_custom_call.1']
    #allocation5 [shape = 'u8[512]{0}', space=smem, size = 0x200, scoped, tag = 'input window, operand 1, single buffered']
    #allocation6 [shape = 's32[1]{0}', space=sflag, size = 0x4, scoped, tag = 'scoped memory for tpu_custom_call.1']
    #allocation7 [shape = 'u8[512]{0}', space=smem, size = 0x200, scoped, tag = 'output window, operand 0, single buffered']
    %9 = vsyncpa [#allocation4], 0
    %10 = vsyncpa [#allocation6], 0
    %11 = vsyncpa [#allocation3], 0
    // Predicated region
    $region2: #{tpu_custom_call.1} parent=1 // pred_check
      _
    $region3: #{tpu_custom_call.1} parent=1 // pred_check_branch
      %13 = sbr.rel (0) target = $region5
    $region4: #{tpu_custom_call.1} parent=1 // pred_region
      %15 = vsyncadd [#allocation4], 0
      %s17 = sshll.u32 %s0, 4
      %s18 = int_to_ptr.vmem [resolvable:$true] %s17
      %20 = dma.vmem_to_smem %s18, 128, [#allocation2], [#allocation4]
    $region5: #{tpu_custom_call.1} parent=1 // pred_fallthru
      _
    // Predicated region
    $region6: #{tpu_custom_call.1} parent=1 // pred_check
      _
    $region7: #{tpu_custom_call.1} parent=1 // pred_check_branch
      %22 = sbr.rel (0) target = $region9
    $region8: #{tpu_custom_call.1} parent=1 // pred_region
      %24 = vsyncadd [#allocation6], 0
      %s26 = sshll.u32 %s1, 4
      %s27 = int_to_ptr.vmem [resolvable:$true] %s26
      %29 = dma.vmem_to_smem %s27, 16, [#allocation5], [#allocation6]
    $region9: #{tpu_custom_call.1} parent=1 // pred_fallthru
      _
    // Predicated region
    $region10: #{tpu_custom_call.1} parent=1 // pred_check
      _
    $region11: #{tpu_custom_call.1} parent=1 // pred_check_branch
      %31 = sbr.rel (0) target = $region13
    $region12: #{tpu_custom_call.1} parent=1 // pred_region
      _
    $region13: #{tpu_custom_call.1} parent=1 // pred_fallthru
      _
    // Predicated region
    $region14: #{tpu_custom_call.1} parent=1 // pred_check
      _
    $region15: #{tpu_custom_call.1} parent=1 // pred_check_branch
      %33 = sbr.rel (0) target = $region17
    $region16: #{tpu_custom_call.1} parent=1 // pred_region
      _
    $region17: #{tpu_custom_call.1} parent=1 // pred_fallthru
      _
    // Predicated region
    $region18: #{tpu_custom_call.1} parent=1 // pred_check
      _
    $region19: #{tpu_custom_call.1} parent=1 // pred_check_branch
      %35 = sbr.rel (0) target = $region21
    $region20: #{tpu_custom_call.1} parent=1 // pred_region
      %37 = dma.done [#allocation4], 128
    $region21: #{tpu_custom_call.1} parent=1 // pred_fallthru
      _
    // Predicated region
    $region22: #{tpu_custom_call.1} parent=1 // pred_check
      _
    $region23: #{tpu_custom_call.1} parent=1 // pred_check_branch
      %39 = sbr.rel (0) target = $region25
    $region24: #{tpu_custom_call.1} parent=1 // pred_region
      %41 = dma.done [#allocation6], 16
    $region25: #{tpu_custom_call.1} parent=1 // pred_fallthru
      _
    %42 = sfence
    %s43 = sld [smem:[#allocation2]]
    %s44 = sld [smem:[#allocation5]]
    %s45 = sld [smem:[#allocation5 + $0x1]]
    %v46 = vld [vmem:[%s2] sm:$0x1]
    %v47 = vstv %s43
    %v48 = vsub.f32 %v47, %v46
    %s49 = ssub.f32 0.0, %s44
    %v50 = vstv %s49
    %v51 = vmul.f32 %v50, %v48
    %v52 = vmul.f32 %v51, %v48
    %v53 = vmul.f32 %v52, 1.442695
    %v54 = vpow.pop %v53
    %v55 = vld [vmem:[%s3] sm:$0x1]
    %v56 = vmul.f32 %v54, %v55
    %vm57 = vcmask 253952
    %v58 = vsel %vm57, %v56, 0.0
    %59 = vadd.xlane.f32.xlu0 %v58
    %v60 = vpop.xlane.xlu0 %59
    %v61 = vrot.slane %v60, 4
    %v62 = vadd.f32 %v60, %v61
    %v63 = vrot.slane %v62, 2
    %v64 = vadd.f32 %v62, %v63
    %v65 = vrot.slane %v64, 1
    %v66 = vadd.f32 %v64, %v65
    %s67 = vtos %v66
    %s68 = sadd.f32 %s67, %s45
    %s69 = scalar_lea.smem [#allocation7], 0
    %70 = sst [smem:[%s69]] %s68
    // Predicated region
    $region26: #{tpu_custom_call.1} parent=1 // pred_check
      _
    $region27: #{tpu_custom_call.1} parent=1 // pred_check_branch
      %72 = sbr.rel (0) target = $region29
    $region28: #{tpu_custom_call.1} parent=1 // pred_region
      %74 = vsyncadd [#allocation3], 0
      %s76 = sshll.u32 %s4, 4
      %s77 = int_to_ptr.hbm [resolvable:$true] %s76
      %79 = dma.smem_to_hbm [#allocation7], 16, %s77, [#allocation3]
    $region29: #{tpu_custom_call.1} parent=1 // pred_fallthru
      _
    // Predicated region
    $region30: #{tpu_custom_call.1} parent=1 // pred_check
      _
    $region31: #{tpu_custom_call.1} parent=1 // pred_check_branch
      %81 = sbr.rel (0) target = $region33
    $region32: #{tpu_custom_call.1} parent=1 // pred_region
      %83 = dma.done [#allocation3], 16
    $region33: #{tpu_custom_call.1} parent=1 // pred_fallthru
      _
    %84 = sfence
    %85 = vsyncpa [#allocation3], 1
    %86 = vsyncpa [#allocation4], 1
    %87 = vsyncpa [#allocation6], 1

</llo_original>
